<compile_context>
chip_gen: v6e
topology: v6e:2x2x1
jax: 0.10.0
libtpu: 0.0.40
codegen_flags: <defaults>
</compile_context>

<pallas_src>
import functools

import jax
import jax.numpy as jnp
from jax.experimental import pallas as pl
from jax.experimental.pallas import tpu as pltpu


# ----------------------------------------------------------------------------
# Ball query (index-selection glue, plain JAX; runs once per forward).
# ----------------------------------------------------------------------------
def ball_query(radius: float, nsample: int, src_xyz, query_xyz):
    # src_xyz: (B, N, 3), query_xyz: (B, M, 3) -> idx (B, M, nsample) int32
    q2 = jnp.sum(query_xyz * query_xyz, axis=-1)[..., :, None]      # (B, M, 1)
    p2 = jnp.sum(src_xyz * src_xyz, axis=-1)[..., None, :]          # (B, 1, N)
    qp = jnp.einsum("bmd,bnd->bmn", query_xyz, src_xyz)             # MXU matmul
    d2 = q2 + p2 - 2.0 * qp                                         # (B, M, N)
    mask = d2 < (radius * radius)
    cnt = jnp.cumsum(mask.astype(jnp.int32), axis=-1)               # hits in prefix
    ks = jnp.arange(nsample, dtype=jnp.int32)
    # index of the (k+1)-th hit == #{j : cnt[j] <= k}; equals N if fewer hits.
    idx = jnp.sum((cnt[..., None] <= ks).astype(jnp.int32), axis=-2)  # (B, M, K)
    total = cnt[..., -1:]                                           # hits per query
    first = idx[..., :1]                                            # first hit (or N)
    idx = jnp.where(ks < total, idx, first)                         # pad with first hit
    idx = jnp.where(total > 0, idx, 0)                              # no hit -> index 0
    return idx.astype(jnp.int32)


# ----------------------------------------------------------------------------
# Pallas kernel: max over K of the gathered, pre-multiplied table + base add.
# g_ref    : (1, TN, K*Cout) bf16  -- gathered T[idx], K blocks contiguous on lanes
# base_ref : (1, TN, Cout)   f32   -- K-invariant term (X1@W_x + bias - P1@W_d)
# o_ref    : (1, TN, Cout)   f32
# ----------------------------------------------------------------------------
def _max_corr_kernel(g_ref, base_ref, o_ref):
    cout = o_ref.shape[2]
    k = g_ref.shape[2] // cout
    g = g_ref[0].astype(jnp.float32)          # f32 elementwise (v5e-safe)
    m = g[:, 0:cout]
    for j in range(1, k):                     # static unroll, K is small
        m = jnp.maximum(m, g[:, j * cout:(j + 1) * cout])
    o_ref[0] = (m + base_ref[0]).astype(o_ref.dtype)


def _pick_tile(n: int, target: int = 1024) -> int:
    """Largest tile <= target that divides n and is a multiple of 8 (else full n)."""
    if n <= target:
        return n
    for t in range(target, 7, -8):
        if n % t == 0:
            return t
    return n  # full-extent block is always legal


# ----------------------------------------------------------------------------
# Public wrapper (PyTorch layout in / out).
# ----------------------------------------------------------------------------
@functools.partial(jax.jit, static_argnames=("radius", "nsamples", "tile_n"))
def point_spatio_temporal_correlation(P1, P2, X1, S2, W, bias,
                                      *, radius: float, nsamples: int,
                                      tile_n: int | None = None):
    """
    P1, P2: (B, N, 3)   X1: (B, Cin, N)   S2: (B, Cout, N)
    W: (Cout + Cin + 3, Cout)   bias: (Cout,)
    returns S1: (B, Cout, N)
    """
    B, N, _ = P1.shape
    Cin = X1.shape[1]
    Cout = S2.shape[1]
    K = nsamples

    P1 = P1.astype(jnp.float32)
    P2 = P2.astype(jnp.float32)
    X1 = X1.astype(jnp.float32)
    S2 = S2.astype(jnp.float32)
    W = W.astype(jnp.float32)
    bias = bias.astype(jnp.float32)

    # Weight row blocks in the concat order [S2 | X1 | disp].
    W_s = W[:Cout, :]
    W_x = W[Cout:Cout + Cin, :]
    W_d = W[Cout + Cin:, :]

    # Pre-gather hoist: per-source-point contribution (query-independent) ...
    T = jnp.einsum("bcn,cd->bnd", S2, W_s) + jnp.einsum("bnj,jd->bnd", P2, W_d)
    # ... and per-query K-invariant term (exact to move outside the max).
    base = (jnp.einsum("bcn,cd->bnd", X1, W_x) + bias
            - jnp.einsum("bnj,jd->bnd", P1, W_d))                  # (B, N, Cout)

    # Neighbor indices + gather of the small pre-multiplied table.  Casting T
    # to bf16 *before* the gather halves the gather's HBM writes and removes a
    # separate convert pass over the K-expanded tensor.
    # TODO(synk): the data-dependent gather stays in XLA; an in-kernel DMA/take
    # gather over a VMEM-resident table would remove the K-expanded HBM round trip.
    idx = ball_query(radius, K, P2, P1)                            # (B, N, K)
    bidx = jnp.arange(B, dtype=jnp.int32)[:, None, None]
    T_bf = T.astype(jnp.bfloat16)
    G = T_bf[bidx, idx].reshape(B, N, K * Cout)                    # lane-dense stream

    if tile_n is not None:
        assert N % tile_n == 0 and (tile_n % 8 == 0 or tile_n == N), (N, tile_n)
        TN = tile_n
    else:
        TN = _pick_tile(N)
    grid = (B, N // TN)

    out_nl = pl.pallas_call(
        _max_corr_kernel,
        out_shape=jax.ShapeDtypeStruct((B, N, Cout), jnp.float32),
        grid=grid,
        in_specs=[
            pl.BlockSpec((1, TN, K * Cout), lambda b, i: (b, i, 0)),
            pl.BlockSpec((1, TN, Cout), lambda b, i: (b, i, 0)),
        ],
        out_specs=pl.BlockSpec((1, TN, Cout), lambda b, i: (b, i, 0)),
        compiler_params=pltpu.CompilerParams(
            dimension_semantics=("parallel", "parallel")),
    )(G, base)

    return jnp.transpose(out_nl, (0, 2, 1))                        # (B, Cout, N)


# ----------------------------------------------------------------------------
# Pure-JAX reference mirroring the PyTorch forward exactly (f32 end to end).
# ----------------------------------------------------------------------------
def reference_forward(P1, P2, X1, S2, W, bias, *, radius, nsamples):
    B, N, _ = P1.shape
    Cin = X1.shape[1]
    idx = ball_query(radius, nsamples, P2, P1)
    bidx = jnp.arange(B)[:, None, None]
    P2_grouped = P2[bidx, idx]                                     # (B, N, K, 3)
    S2_grouped = jnp.transpose(S2, (0, 2, 1))[bidx, idx]           # (B, N, K, Cout)
    disp = P2_grouped - P1[:, :, None, :]                          # (B, N, K, 3)
    X1_rep = jnp.broadcast_to(jnp.transpose(X1, (0, 2, 1))[:, :, None, :],
                              (B, N, nsamples, Cin))
    corr = jnp.concatenate([S2_grouped, X1_rep, disp], axis=-1)    # (B,N,K,Ctot)
    s1 = jnp.einsum("bnkc,cd->bnkd", corr, W) + bias               # 1x1 conv
    s1 = jnp.max(s1, axis=2)                                       # max over K
    return jnp.transpose(s1, (0, 2, 1))                            # (B, Cout, N)


if __name__ == "__main__":
    B, N = 2, 128
    Cin, Cout = 4, 32
    radius, nsamples = 0.5, 8

    key = jax.random.PRNGKey(0)
    k1, k2, k3, k4, k5, k6 = jax.random.split(key, 6)
    P1 = jax.random.uniform(k1, (B, N, 3), dtype=jnp.float32)
    P2 = jax.random.uniform(k2, (B, N, 3), dtype=jnp.float32)
    X1 = jax.random.normal(k3, (B, Cin, N), dtype=jnp.float32)
    S2 = jax.random.normal(k4, (B, Cout, N), dtype=jnp.float32)

    Ctot = Cout + Cin + 3
    W = 0.1 * jax.random.normal(k5, (Ctot, Cout), dtype=jnp.float32)
    bias = 0.1 * jax.random.normal(k6, (Cout,), dtype=jnp.float32)

    # tile_n=32 forces a (B, N/32) grid so the multi-tile path is exercised
    # even at this small demo size (auto-tiling would use a single tile).
    out = point_spatio_temporal_correlation(
        P1, P2, X1, S2, W, bias, radius=radius, nsamples=nsamples, tile_n=32)
    out = jax.block_until_ready(out)

    ref = reference_forward(P1, P2, X1, S2, W, bias,
                            radius=radius, nsamples=nsamples)
    assert out.shape == (B, Cout, N)
    # Gathered table is streamed in bf16 -> relaxed tolerance vs the f32 reference.
    err = float(jnp.max(jnp.abs(out - ref)))
    assert jnp.allclose(out, ref, atol=2e-2, rtol=2e-2), err

    print("KERNEL_OK")
</pallas_src>

<mosaic_0001>
module attributes {stable_mosaic.version = 11 : i64} {
  func.func @_max_corr_kernel(%arg0: i32, %arg1: i32, %arg2: memref<1x32x256xbf16, #tpu.memory_space<vmem>>, %arg3: memref<1x32x32xf32, #tpu.memory_space<vmem>>, %arg4: memref<1x32x32xf32, #tpu.memory_space<vmem>>) attributes {dimension_semantics = [#tpu.dimension_semantics<parallel>, #tpu.dimension_semantics<parallel>], iteration_bounds = array<i64: 2, 4>, scalar_prefetch = 0 : i64, scratch_operands = 0 : i64, tpu.core_type = #tpu.core_type<tc>, window_params = [{transform_indices = @transform_0, window_bounds = array<i64: 1, 32, 256>}, {transform_indices = @transform_1, window_bounds = array<i64: 1, 32, 32>}, {transform_indices = @transform_2, window_bounds = array<i64: 1, 32, 32>}]} {
    %c0 = arith.constant 0 : index
    %c0_0 = arith.constant 0 : index
    %c0_1 = arith.constant 0 : index
    %0 = vector.load %arg2[%c0, %c0_0, %c0_1] : memref<1x32x256xbf16, #tpu.memory_space<vmem>>, vector<1x32x256xbf16>
    %1 = vector.shape_cast %0 : vector<1x32x256xbf16> to vector<32x256xbf16>
    %2 = arith.extf %1 : vector<32x256xbf16> to vector<32x256xf32>
    %3 = vector.extract_strided_slice %2 {offsets = [0, 0], sizes = [32, 32], strides = [1, 1]} : vector<32x256xf32> to vector<32x32xf32>
    %4 = vector.extract_strided_slice %2 {offsets = [0, 32], sizes = [32, 32], strides = [1, 1]} : vector<32x256xf32> to vector<32x32xf32>
    %5 = arith.maximumf %3, %4 : vector<32x32xf32>
    %6 = vector.extract_strided_slice %2 {offsets = [0, 64], sizes = [32, 32], strides = [1, 1]} : vector<32x256xf32> to vector<32x32xf32>
    %7 = arith.maximumf %5, %6 : vector<32x32xf32>
    %8 = vector.extract_strided_slice %2 {offsets = [0, 96], sizes = [32, 32], strides = [1, 1]} : vector<32x256xf32> to vector<32x32xf32>
    %9 = arith.maximumf %7, %8 : vector<32x32xf32>
    %10 = vector.extract_strided_slice %2 {offsets = [0, 128], sizes = [32, 32], strides = [1, 1]} : vector<32x256xf32> to vector<32x32xf32>
    %11 = arith.maximumf %9, %10 : vector<32x32xf32>
    %12 = vector.extract_strided_slice %2 {offsets = [0, 160], sizes = [32, 32], strides = [1, 1]} : vector<32x256xf32> to vector<32x32xf32>
    %13 = arith.maximumf %11, %12 : vector<32x32xf32>
    %14 = vector.extract_strided_slice %2 {offsets = [0, 192], sizes = [32, 32], strides = [1, 1]} : vector<32x256xf32> to vector<32x32xf32>
    %15 = arith.maximumf %13, %14 : vector<32x32xf32>
    %16 = vector.extract_strided_slice %2 {offsets = [0, 224], sizes = [32, 32], strides = [1, 1]} : vector<32x256xf32> to vector<32x32xf32>
    %17 = arith.maximumf %15, %16 : vector<32x32xf32>
    %c0_2 = arith.constant 0 : index
    %c0_3 = arith.constant 0 : index
    %c0_4 = arith.constant 0 : index
    %18 = vector.load %arg3[%c0_2, %c0_3, %c0_4] : memref<1x32x32xf32, #tpu.memory_space<vmem>>, vector<1x32x32xf32>
    %19 = vector.shape_cast %18 : vector<1x32x32xf32> to vector<32x32xf32>
    %20 = arith.addf %17, %19 : vector<32x32xf32>
    %c0_5 = arith.constant 0 : index
    %c0_6 = arith.constant 0 : index
    %c0_7 = arith.constant 0 : index
    %21 = vector.load %arg4[%c0_5, %c0_6, %c0_7] : memref<1x32x32xf32, #tpu.memory_space<vmem>>, vector<1x32x32xf32>
    %22 = vector.shape_cast %21 : vector<1x32x32xf32> to vector<32x32xf32>
    %23 = vector.shape_cast %20 : vector<32x32xf32> to vector<1x32x32xf32>
    tpu.vector_store %arg4[%c0_5, %c0_6, %c0_7], %23 {strides = array<i32>} : memref<1x32x32xf32, #tpu.memory_space<vmem>>, vector<1x32x32xf32>,
    return
  }
  func.func @transform_0(%arg0: i32, %arg1: i32) -> (i32, i32, i32) {
    %c0_i32 = arith.constant 0 : i32
    %c0_i32_0 = arith.constant 0 : i32
    return %arg0, %arg1, %c0_i32 : i32, i32, i32
  }
  func.func @transform_1(%arg0: i32, %arg1: i32) -> (i32, i32, i32) {
    %c0_i32 = arith.constant 0 : i32
    %c0_i32_0 = arith.constant 0 : i32
    return %arg0, %arg1, %c0_i32 : i32, i32, i32
  }
  func.func @transform_2(%arg0: i32, %arg1: i32) -> (i32, i32, i32) {
    %c0_i32 = arith.constant 0 : i32
    %c0_i32_0 = arith.constant 0 : i32
    return %arg0, %arg1, %c0_i32 : i32, i32, i32
  }
}

</mosaic_0001>

<llo_original>
// kernel: point_spatio_temporal_correlation.1
$region0: #{point_spatio_temporal_correlation.1}
  #allocation0 [shape = 'u32[]', space=smem, size = 0x4, offset = 0x4, fixed_abs, tag = 'smem constant byte address 0x4 - core index']
  #allocation1 [shape = 'u32[144,128]{1,0:T(1,128)}', space=vmem, size = 0x12000, scoped, tag = 'internal scratch']
  %s0 = inlined_call_operand.vmem [shape: bf16[2,128,256], index: 0, kind: input, shape index: {}]
  %s1 = inlined_call_operand.vmem [shape: f32[2,128,32], index: 1, kind: input, shape index: {}]
  %s2 = inlined_call_operand.vmem [shape: f32[2,128,32], index: 2, kind: output, shape index: {}]
  %s3 = sld [smem:[#allocation0]]
  $region41: #{point_spatio_temporal_correlation.1} parent=0
    _
  %s5 = ssub.s32 1, %s3
  %s6 = scalar_select 0, %s5, %s3
  loop: start=0, step=1, limit=10
  $region2: #{point_spatio_temporal_correlation.1} parent=0 // loop_pre_header
    _
  $region3: #{point_spatio_temporal_correlation.1} parent=0 // loop_header
    %s8 = sphi 0, %s12
    %p9 = scmp.ge.s32.totalorder %s8, 10
    %s15 = sphi 0, %s27
    %s16 = sphi 0, %s23
    %s17 = sphi 0, %s15
    %s18 = sphi 0, %s16
    %s19 = sphi 0, %s17
    %s20 = sphi 0, %s18
    %s32 = sphi 0, %s34
    %s35 = sphi 0, %s32
    %s36 = sphi 0, %s35
    %s52 = sphi 0, %s36
    %s60 = sphi 0, %s62
    %s63 = sphi 0, %s60
    %s64 = sphi 0, %s63
    %s80 = sphi 0, %s64
    %s88 = sphi 0, %s90
    %s91 = sphi 0, %s88
    %s92 = sphi 0, %s91
    %s108 = sphi 0, %s92
  $region4: #{point_spatio_temporal_correlation.1} parent=0 // loop_header_branch
    %11 = sbr.rel (%p9) target = $region8
  $region5: #{point_spatio_temporal_correlation.1} parent=0 // loop_body
    %s13 = ssub.s32 %s8, 1
    %s14 = ssub.s32 %s8, 2
    %s21 = sadd.s32 1, %s16
    %p22 = scmp.ge.s32.totalorder %s21, 4
    %s23 = scalar_select %p22, 0, %s21
    %s24 = sadd.s32 1, %s15
    %s25 = scalar_select %p22, %s24, %s15
    %p26 = scmp.ge.s32.totalorder %s25, 2
    %s27 = scalar_select %p26, 0, %s25
    %s28 = ssub.s32 %s15, %s27
    %s29 = ssub.s32 %s16, %s23
    %s30 = sor.u32 %s28, %s29
    %p31 = scmp.eq.s32.totalorder %s30, 0
    %s33 = sadd.s32 %s32, 1
    %s34 = scalar_select %p31, %s32, %s33
    %p37 = pneg %p31
    %p38 = scmp.eq.s32.totalorder %s8, 7
    %p39 = por %p37, %p38
    %p40 = scmp.ne.s32.totalorder %s32, %s35
    %p41 = scmp.eq.s32.totalorder %s8, 0
    %p42 = por %p40, %p41
    %p43 = scmp.ne.s32.totalorder %s32, %s35
    %p44 = scmp.eq.s32.totalorder %s13, 7
    %p45 = por %p43, %p44
    %p46 = scmp.ne.s32.totalorder %s35, %s36
    %p47 = scmp.eq.s32.totalorder %s13, 0
    %p48 = por %p46, %p47
    %p49 = scmp.ne.s32.totalorder %s35, %s36
    %p50 = scmp.eq.s32.totalorder %s14, 7
    %p51 = por %p49, %p50
    %p53 = scmp.ne.s32.totalorder %s36, %s52
    %p54 = scmp.eq.s32.totalorder %s14, 0
    %p55 = por %p53, %p54
    %s56 = ssub.s32 %s15, %s27
    %s57 = ssub.s32 %s16, %s23
    %s58 = sor.u32 %s56, %s57
    %p59 = scmp.eq.s32.totalorder %s58, 0
    %s61 = sadd.s32 %s60, 1
    %s62 = scalar_select %p59, %s60, %s61
    %p65 = pneg %p59
    %p66 = scmp.eq.s32.totalorder %s8, 7
    %p67 = por %p65, %p66
    %p68 = scmp.ne.s32.totalorder %s60, %s63
    %p69 = scmp.eq.s32.totalorder %s8, 0
    %p70 = por %p68, %p69
    %p71 = scmp.ne.s32.totalorder %s60, %s63
    %p72 = scmp.eq.s32.totalorder %s13, 7
    %p73 = por %p71, %p72
    %p74 = scmp.ne.s32.totalorder %s63, %s64
    %p75 = scmp.eq.s32.totalorder %s13, 0
    %p76 = por %p74, %p75
    %p77 = scmp.ne.s32.totalorder %s63, %s64
    %p78 = scmp.eq.s32.totalorder %s14, 7
    %p79 = por %p77, %p78
    %p81 = scmp.ne.s32.totalorder %s64, %s80
    %p82 = scmp.eq.s32.totalorder %s14, 0
    %p83 = por %p81, %p82
    %s84 = ssub.s32 %s15, %s27
    %s85 = ssub.s32 %s16, %s23
    %s86 = sor.u32 %s84, %s85
    %p87 = scmp.eq.s32.totalorder %s86, 0
    %s89 = sadd.s32 %s88, 1
    %s90 = scalar_select %p87, %s88, %s89
    %p93 = pneg %p87
    %p94 = scmp.eq.s32.totalorder %s8, 7
    %p95 = por %p93, %p94
    %p96 = scmp.ne.s32.totalorder %s88, %s91
    %p97 = scmp.eq.s32.totalorder %s8, 0
    %p98 = por %p96, %p97
    %p99 = scmp.ne.s32.totalorder %s88, %s91
    %p100 = scmp.eq.s32.totalorder %s13, 7
    %p101 = por %p99, %p100
    %p102 = scmp.ne.s32.totalorder %s91, %s92
    %p103 = scmp.eq.s32.totalorder %s13, 0
    %p104 = por %p102, %p103
    %p105 = scmp.ne.s32.totalorder %s91, %s92
    %p106 = scmp.eq.s32.totalorder %s14, 7
    %p107 = por %p105, %p106
    %p109 = scmp.ne.s32.totalorder %s92, %s108
    %p110 = scmp.eq.s32.totalorder %s14, 0
    %p111 = por %p109, %p110
    %p112 = scmp.le.s32.totalorder 1, %s8
    %p113 = scmp.lt.s32.totalorder %s8, 9
    %p114 = pnand %p112, %p113
    %p115 = pneg %p114
    // Predicated region
    $region9: #{point_spatio_temporal_correlation.1} parent=5 // pred_check
      _
    $region10: #{point_spatio_temporal_correlation.1} parent=5 // pred_check_branch
      %117 = sbr.rel (%p114) target = $region12
    $region11: #{point_spatio_temporal_correlation.1} parent=5 // pred_region
      %s118 = ssub.s32 %s8, 1
    $region12: #{point_spatio_temporal_correlation.1} parent=5 // pred_fallthru
      _
    %p119 = scmp.lt.s32.totalorder %s8, 8
    // Predicated region
    $region13: #{point_spatio_temporal_correlation.1} parent=5 // pred_check
      %p120 = pneg %p119
    $region14: #{point_spatio_temporal_correlation.1} parent=5 // pred_check_branch
      %122 = sbr.rel (%p120) target = $region16
    $region15: #{point_spatio_temporal_correlation.1} parent=5 // pred_region
      // Predicated region
      $region17: #{point_spatio_temporal_correlation.1} parent=15 // pred_check
        %p123 = pneg %p42
      $region18: #{point_spatio_temporal_correlation.1} parent=15 // pred_check_branch
        %125 = sbr.rel (%p123) target = $region20
      $region19: #{point_spatio_temporal_correlation.1} parent=15 // pred_region
        %s126 = smul.u32 4, %s16
        %p127 = scmp.lt.s32.totalorder %s15, 1
        %s128 = scalar_select %p127, %s15, 1
        %p129 = scmp.lt.s32.totalorder %s126, 15
        %s130 = scalar_select %p129, %s126, 15
        %s131 = smul.addr %s130, 2
        %s132 = smul.addr %s128, 32
        %s133 = sadd.s32 %s131, %s132
        %s134 = smul.addr %s133, 4
        %s135 = scalar_lea.vmem %s0, %s134
        %s136 = smul.u32 4, %s16
      $region20: #{point_spatio_temporal_correlation.1} parent=15 // pred_fallthru
        _
      // Predicated region
      $region21: #{point_spatio_temporal_correlation.1} parent=15 // pred_check
        %p137 = pneg %p70
      $region22: #{point_spatio_temporal_correlation.1} parent=15 // pred_check_branch
        %139 = sbr.rel (%p137) target = $region24
      $region23: #{point_spatio_temporal_correlation.1} parent=15 // pred_region
        %s140 = smul.u32 4, %s16
        %p141 = scmp.lt.s32.totalorder %s15, 1
        %s142 = scalar_select %p141, %s15, 1
        %p143 = scmp.lt.s32.totalorder %s140, 15
        %s144 = scalar_select %p143, %s140, 15
        %s145 = smul.addr %s142, 16
        %s146 = sadd.s32 %s144, %s145
        %s147 = smul.addr %s146, 8
        %s148 = scalar_lea.vmem %s1, %s147
        %s149 = smul.u32 4, %s16
      $region24: #{point_spatio_temporal_correlation.1} parent=15 // pred_fallthru
        _
    $region16: #{point_spatio_temporal_correlation.1} parent=5 // pred_fallthru
      _
    %p150 = scmp.le.s32.totalorder 1, %s8
    %p151 = scmp.lt.s32.totalorder %s8, 9
    %p152 = pnand %p150, %p151
    %p153 = pneg %p152
    // Predicated region
    $region25: #{point_spatio_temporal_correlation.1} parent=5 // pred_check
      _
    $region26: #{point_spatio_temporal_correlation.1} parent=5 // pred_check_branch
      %155 = sbr.rel (%p152) target = $region28
    $region27: #{point_spatio_temporal_correlation.1} parent=5 // pred_region
      %s156 = ssub.s32 %s8, 1
      %s157 = smul.u32 4, %s18
      %p158 = scmp.lt.s32.totalorder %s17, 1
      %s159 = scalar_select %p158, %s17, 1
      %p160 = scmp.lt.s32.totalorder %s157, 15
      %s161 = scalar_select %p160, %s157, 15
      %s162 = smul.addr %s161, 2
      %s163 = smul.addr %s159, 32
      %s164 = sadd.s32 %s162, %s163
      %s165 = smul.addr %s164, 4
      %s166 = scalar_lea.vmem %s0, %s165
      %p167 = pneg %p48
      %p168 = pneg %p45
      %s169 = smul.u32 4, %s18
      %p170 = scmp.lt.s32.totalorder %s17, 1
      %s171 = scalar_select %p170, %s17, 1
      %p172 = scmp.lt.s32.totalorder %s169, 15
      %s173 = scalar_select %p172, %s169, 15
      %s174 = smul.addr %s171, 16
      %s175 = sadd.s32 %s173, %s174
      %s176 = smul.addr %s175, 8
      %s177 = scalar_lea.vmem %s1, %s176
      %p178 = pneg %p76
      %p179 = pneg %p73
      %p180 = pneg %p104
      %p181 = pneg %p101
      %s182 = smul.u32 4, %s18
      %p183 = scmp.lt.s32.totalorder %s17, 1
      %s184 = scalar_select %p183, %s17, 1
      %p185 = scmp.lt.s32.totalorder %s182, 15
      %s186 = scalar_select %p185, %s182, 15
      %s187 = smul.addr %s184, 16
      %s188 = sadd.s32 %s186, %s187
      %s189 = smul.addr %s188, 8
      %s190 = scalar_lea.vmem %s2, %s189
      %s191 = smul.u32 4, %s18
      %p192 = scmp.lt.s32.totalorder %s17, 1
      %s193 = scalar_select %p192, %s17, 1
      %p194 = scmp.lt.s32.totalorder %s191, 15
      %s195 = scalar_select %p194, %s191, 15
      %s196 = smul.addr %s195, 2
      %s197 = smul.addr %s193, 32
      %s198 = sadd.s32 %s196, %s197
      %s199 = smul.addr %s198, 4
      %s200 = scalar_lea.vmem %s0, %s199
      %s201 = smul.u32 4, %s18
      %s202 = smul.u32 4, %s18
      %p203 = scmp.lt.s32.totalorder %s17, 1
      %s204 = scalar_select %p203, %s17, 1
      %p205 = scmp.lt.s32.totalorder %s202, 15
      %s206 = scalar_select %p205, %s202, 15
      %s207 = smul.addr %s204, 16
      %s208 = sadd.s32 %s206, %s207
      %s209 = smul.addr %s208, 8
      %s210 = scalar_lea.vmem %s1, %s209
      %s211 = smul.u32 4, %s18
      %s212 = smul.u32 4, %s18
      %p213 = scmp.lt.s32.totalorder %s17, 1
      %s214 = scalar_select %p213, %s17, 1
      %p215 = scmp.lt.s32.totalorder %s212, 15
      %s216 = scalar_select %p215, %s212, 15
      %s217 = smul.addr %s214, 16
      %s218 = sadd.s32 %s216, %s217
      %s219 = smul.addr %s218, 8
      %s220 = scalar_lea.vmem %s2, %s219
      %s221 = smul.u32 4, %s18
      %v222 = vld [vmem:[%s200] sm:$0xff]
      %v223 = vld [vmem:[%s200 + $0x8] sm:$0xff]
      %v224 = vld [vmem:[%s200 + $0x10] sm:$0xff]
      %v225 = vld [vmem:[%s200 + $0x18] sm:$0xff]
      %v226 = vunpack.c.l.bf16 %v222
      %v227 = vunpack.c.h.bf16 %v222
      %v228 = vunpack.c.l.bf16 %v223
      %v229 = vunpack.c.h.bf16 %v223
      %v230 = vunpack.c.l.bf16 %v224
      %v231 = vunpack.c.h.bf16 %v224
      %v232 = vunpack.c.l.bf16 %v225
      %v233 = vunpack.c.h.bf16 %v225
      %238 = vrot.lane.b32.xlu0 %v226, 96
      %v239 = vpop.permute.xlu0 %238
      %240 = vrot.lane.b32.xlu0 %v228, 96
      %v241 = vpop.permute.xlu0 %240
      %242 = vrot.lane.b32.xlu0 %v230, 96
      %v243 = vpop.permute.xlu0 %242
      %244 = vrot.lane.b32.xlu0 %v232, 96
      %v245 = vpop.permute.xlu0 %244
      %v250 = vmax.f32 %v226, %v239
      %v251 = vmax.f32 %v228, %v241
      %v252 = vmax.f32 %v230, %v243
      %v253 = vmax.f32 %v232, %v245
      %254 = vrot.lane.b32.xlu0 %v226, 64
      %v255 = vpop.permute.xlu0 %254
      %256 = vrot.lane.b32.xlu0 %v228, 64
      %v257 = vpop.permute.xlu0 %256
      %258 = vrot.lane.b32.xlu0 %v230, 64
      %v259 = vpop.permute.xlu0 %258
      %260 = vrot.lane.b32.xlu0 %v232, 64
      %v261 = vpop.permute.xlu0 %260
      %v266 = vmax.f32 %v250, %v255
      %v267 = vmax.f32 %v251, %v257
      %v268 = vmax.f32 %v252, %v259
      %v269 = vmax.f32 %v253, %v261
      %270 = vrot.lane.b32.xlu0 %v226, 32
      %v271 = vpop.permute.xlu0 %270
      %272 = vrot.lane.b32.xlu0 %v228, 32
      %v273 = vpop.permute.xlu0 %272
      %274 = vrot.lane.b32.xlu0 %v230, 32
      %v275 = vpop.permute.xlu0 %274
      %276 = vrot.lane.b32.xlu0 %v232, 32
      %v277 = vpop.permute.xlu0 %276
      %v282 = vmax.f32 %v266, %v271
      %v283 = vmax.f32 %v267, %v273
      %v284 = vmax.f32 %v268, %v275
      %v285 = vmax.f32 %v269, %v277
      %v286 = vmax.f32 %v282, %v227
      %v287 = vmax.f32 %v283, %v229
      %v288 = vmax.f32 %v284, %v231
      %v289 = vmax.f32 %v285, %v233
      %294 = vrot.lane.b32.xlu0 %v227, 96
      %v295 = vpop.permute.xlu0 %294
      %296 = vrot.lane.b32.xlu0 %v229, 96
      %v297 = vpop.permute.xlu0 %296
      %298 = vrot.lane.b32.xlu0 %v231, 96
      %v299 = vpop.permute.xlu0 %298
      %300 = vrot.lane.b32.xlu0 %v233, 96
      %v301 = vpop.permute.xlu0 %300
      %v306 = vmax.f32 %v286, %v295
      %v307 = vmax.f32 %v287, %v297
      %v308 = vmax.f32 %v288, %v299
      %v309 = vmax.f32 %v289, %v301
      %310 = vrot.lane.b32.xlu0 %v227, 64
      %v311 = vpop.permute.xlu0 %310
      %312 = vrot.lane.b32.xlu0 %v229, 64
      %v313 = vpop.permute.xlu0 %312
      %314 = vrot.lane.b32.xlu0 %v231, 64
      %v315 = vpop.permute.xlu0 %314
      %316 = vrot.lane.b32.xlu0 %v233, 64
      %v317 = vpop.permute.xlu0 %316
      %v322 = vmax.f32 %v306, %v311
      %v323 = vmax.f32 %v307, %v313
      %v324 = vmax.f32 %v308, %v315
      %v325 = vmax.f32 %v309, %v317
      %326 = vrot.lane.b32.xlu0 %v227, 32
      %v327 = vpop.permute.xlu0 %326
      %328 = vrot.lane.b32.xlu0 %v229, 32
      %v329 = vpop.permute.xlu0 %328
      %330 = vrot.lane.b32.xlu0 %v231, 32
      %v331 = vpop.permute.xlu0 %330
      %332 = vrot.lane.b32.xlu0 %v233, 32
      %v333 = vpop.permute.xlu0 %332
      %v338 = vmax.f32 %v322, %v327
      %v339 = vmax.f32 %v323, %v329
      %v340 = vmax.f32 %v324, %v331
      %v341 = vmax.f32 %v325, %v333
      %v342 = vld [vmem:[%s210] sm:$0xff]
      %v343 = vld [vmem:[%s210 + $0x8] sm:$0xff]
      %v344 = vld [vmem:[%s210 + $0x10] sm:$0xff]
      %v345 = vld [vmem:[%s210 + $0x18] sm:$0xff]
      %v346 = vadd.f32 %v338, %v342
      %v347 = vadd.f32 %v339, %v343
      %v348 = vadd.f32 %v340, %v344
      %v349 = vadd.f32 %v341, %v345
      %vm350 = vcmask 261120
      %351 = vst.msk [vmem:[%s220] sm:$0xff] %vm350, %v346
      %352 = vst.msk [vmem:[%s220 + $0x8] sm:$0xff] %vm350, %v347
      %353 = vst.msk [vmem:[%s220 + $0x10] sm:$0xff] %vm350, %v348
      %354 = vst.msk [vmem:[%s220 + $0x18] sm:$0xff] %vm350, %v349
      %s355 = smul.u32 4, %s18
      %p356 = scmp.lt.s32.totalorder %s17, 1
      %s357 = scalar_select %p356, %s17, 1
      %p358 = scmp.lt.s32.totalorder %s355, 15
      %s359 = scalar_select %p358, %s355, 15
      %s360 = smul.addr %s357, 16
      %s361 = sadd.s32 %s359, %s360
      %s362 = smul.addr %s361, 8
      %s363 = scalar_lea.vmem %s2, %s362
      // Predicated region
      $region29: #{point_spatio_temporal_correlation.1} parent=27 // pred_check
        %p364 = pneg %p101
      $region30: #{point_spatio_temporal_correlation.1} parent=27 // pred_check_branch
        %366 = sbr.rel (%p364) target = $region32
      $region31: #{point_spatio_temporal_correlation.1} parent=27 // pred_region
        %s367 = smul.u32 4, %s18
      $region32: #{point_spatio_temporal_correlation.1} parent=27 // pred_fallthru
        _
    $region28: #{point_spatio_temporal_correlation.1} parent=5 // pred_fallthru
      _
    %p368 = scmp.le.s32.totalorder 2, %s8
    // Predicated region
    $region33: #{point_spatio_temporal_correlation.1} parent=5 // pred_check
      %p369 = pneg %p368
    $region34: #{point_spatio_temporal_correlation.1} parent=5 // pred_check_branch
      %371 = sbr.rel (%p369) target = $region36
    $region35: #{point_spatio_temporal_correlation.1} parent=5 // pred_region
      %s372 = ssub.s32 %s8, 2
      // Predicated region
      $region37: #{point_spatio_temporal_correlation.1} parent=35 // pred_check
        %p373 = pneg %p107
      $region38: #{point_spatio_temporal_correlation.1} parent=35 // pred_check_branch
        %375 = sbr.rel (%p373) target = $region40
      $region39: #{point_spatio_temporal_correlation.1} parent=35 // pred_region
        %s376 = smul.u32 4, %s20
        %p377 = scmp.lt.s32.totalorder %s19, 1
        %s378 = scalar_select %p377, %s19, 1
        %p379 = scmp.lt.s32.totalorder %s376, 15
        %s380 = scalar_select %p379, %s376, 15
        %s381 = smul.addr %s378, 16
        %s382 = sadd.s32 %s380, %s381
        %s383 = smul.addr %s382, 8
        %s384 = scalar_lea.vmem %s2, %s383
      $region40: #{point_spatio_temporal_correlation.1} parent=35 // pred_fallthru
        _
    $region36: #{point_spatio_temporal_correlation.1} parent=5 // pred_fallthru
      _
  $region6: #{point_spatio_temporal_correlation.1} parent=0 // loop_footer
    %s12 = sadd.s32 1, %s8
  $region7: #{point_spatio_temporal_correlation.1} parent=0 // loop_footer_branch
    %7 = sbr.rel target = $region3
  $region8: #{point_spatio_temporal_correlation.1} parent=0 // loop_exit
    _

</llo_original>
